<compile_context>
chip_gen: v7x
topology: tpu7x:2x2x1
jax: 0.10.0
libtpu: 0.0.40
codegen_flags: <defaults>
</compile_context>

<pallas_src>
import functools

import jax
import jax.numpy as jnp
from jax import lax
from jax.experimental import pallas as pl
from jax.experimental.pallas import tpu as pltpu


def _round_up(x: int, m: int) -> int:
    return ((x + m - 1) // m) * m


def _nll_num_kernel(pred_ref, tsel_ref, out_ref, acc_ref, *, c_pad: int):
    """Accumulates per-lane sums of selected (target-class) log-probabilities.

    pred_ref: (br, 128) lane-dense packed log-probs, native dtype
    tsel_ref: (br, 128) int8 target class per packed position (-1 = padding)
    out_ref:  (8, 128) f32 per-lane partial sums (written on last inner step)
    acc_ref:  (8, 128) f32 VMEM scratch accumulator
    """
    i = pl.program_id(1)

    @pl.when(i == 0)
    def _init():
        acc_ref[...] = jnp.zeros_like(acc_ref)

    # Cast right after load (pred may arrive as bf16); all arithmetic in f32.
    pred = pred_ref[...].astype(jnp.float32)          # (br, 128)
    # Widen the int8 target tile for the compare. (A pure int8 compare against a
    # sublane-broadcast (1,128) int8 would save the unpack, but the unpack is ~1
    # VPU op per data vreg with ample slack at the HBM roofline, and the int32
    # compare path is known to lower cleanly.)
    tsel = tsel_ref[...].astype(jnp.int32)            # (br, 128)

    # c_pad is a power of two dividing 128, so class(lane) = lane & (c_pad - 1).
    lane_cls = lax.broadcasted_iota(jnp.int32, (1, 128), 1) & (c_pad - 1)

    contrib = jnp.where(tsel == lane_cls, pred, 0.0)  # (br, 128)
    # In-register tile reduction to one vreg, then a single scratch RMW.
    acc_ref[...] += contrib.reshape(-1, 8, 128).sum(axis=0)

    @pl.when(i == pl.num_programs(1) - 1)
    def _finalize():
        out_ref[...] = acc_ref[...]


def get_loss_pallas(pred, target, trans_feat, weight, *, block_rows: int = 4096):
    """Pallas equivalent of get_loss.forward (weighted-mean NLL loss).

    pred:       (N, C) log-probabilities (f32 or bf16 — kept in native dtype)
    target:     (N,)   integer class labels
    trans_feat: unused (kept for signature parity with the PyTorch module)
    weight:     (C,)   per-class weights
    returns scalar float32 loss
    """
    del trans_feat  # the PyTorch forward ignores it as well
    N, C = pred.shape
    if C > 128:
        # TODO(synk): support num_classes > 128 (needs a (rows, C)-blocked path).
        raise NotImplementedError("get_loss_pallas currently supports up to 128 classes")

    # Pad the class dim to a power of two so 128 % c_pad == 0: lane-class is then
    # a fixed function of the lane index. No-op for power-of-two C.
    c_pad = max(int(pl.next_power_of_2(C)), 1)
    g = 128 // c_pad                       # original rows packed per 128-lane row
    n_valid = N * c_pad                    # meaningful flat positions

    # TODO(synk): for non-power-of-two C this pad costs one extra pred HBM round
    # trip; ideally the producing log_softmax would emit (N, c_pad) directly.
    pred_c = pred if c_pad == C else jnp.pad(pred, ((0, 0), (0, c_pad - C)))
    flat = pred_c.reshape(-1)              # contiguous reshape (free)

    # Row-block sizing: multiple of 32 (int8 sublane tiling); rows padded to a
    # multiple of num_par * br so no in-kernel validity mask is needed.
    rows_exact = pl.cdiv(n_valid, 128)
    rows32 = _round_up(rows_exact, 32)
    br = _round_up(min(block_rows, rows32), 32)
    nb = pl.cdiv(rows32, br)
    num_par = 2 if nb >= 2 else 1          # leading parallel axis (both TCs on v7x)
    nb = _round_up(nb, num_par)
    br = _round_up(pl.cdiv(rows32, nb), 32)   # re-balance to keep padding small
    rows = nb * br
    n_inner = nb // num_par
    total = rows * 128

    if total != n_valid:
        flat = jnp.pad(flat, (0, total - n_valid))
    pred_packed = flat.reshape(rows, 128)  # native dtype, lane-dense

    # Per-flat-position target class, int8. Padding slots get -1 (never matches a
    # lane class), which is what makes the mask-free kernel correct.
    # TODO(synk): a compact (N,) int8 target with in-kernel lane expansion would
    # cut ~20-35% of HBM traffic, but the sublane->lane expansion is risky to
    # lower, so the expanded stream is kept.
    tsel = jnp.repeat(target.reshape(-1).astype(jnp.int8), c_pad)
    tsel = jnp.pad(tsel, (0, total - n_valid), constant_values=-1)
    tsel = tsel.reshape(rows, 128)

    kernel = functools.partial(_nll_num_kernel, c_pad=c_pad)

    partials = pl.pallas_call(
        kernel,
        out_shape=jax.ShapeDtypeStruct((num_par * 8, 128), jnp.float32),
        grid_spec=pltpu.PrefetchScalarGridSpec(
            num_scalar_prefetch=0,
            grid=(num_par, n_inner),
            in_specs=[
                pl.BlockSpec((br, 128), lambda p, i: (p * n_inner + i, 0)),
                pl.BlockSpec((br, 128), lambda p, i: (p * n_inner + i, 0)),
            ],
            out_specs=pl.BlockSpec((8, 128), lambda p, i: (p, 0)),
            scratch_shapes=[pltpu.VMEM((8, 128), jnp.float32)],
        ),
        compiler_params=pltpu.CompilerParams(
            dimension_semantics=("parallel", "arbitrary"),
        ),
    )(pred_packed, tsel)

    # Tiny epilogue on (num_par*8, 128): apply per-lane class weight and reduce.
    w_full = weight.astype(jnp.float32).reshape(-1)
    w_pad = w_full if c_pad == C else jnp.pad(w_full, (0, c_pad - C))
    w_lane = jnp.tile(w_pad, g)                                   # (128,)
    num = jnp.sum(partials * w_lane[None, :])   # sum_i w[t_i] * pred[i, t_i]

    # Denominator depends only on (target, weight): cheap wrapper-side reduction,
    # so the hot loop never touches a count accumulator.
    valid = target >= 0
    den = jnp.sum(jnp.where(valid, w_full[jnp.clip(target, 0, C - 1)], 0.0))

    return -num / den


def _reference_nll_loss(pred, target, weight):
    """Pure-JAX reference matching F.nll_loss(pred, target, weight=weight)."""
    w_t = weight[target]                                        # (N,)
    picked = jnp.take_along_axis(pred, target[:, None], axis=1)[:, 0]
    return -jnp.sum(w_t * picked) / jnp.sum(w_t)


if __name__ == "__main__":
    key = jax.random.PRNGKey(0)
    k_logits, k_target, k_feat, k_logits3 = jax.random.split(key, 4)

    # Case 1: batch=2, npoints=16, 8 classes, f32 log-probs (single grid step).
    batch, npoints, num_classes = 2, 16, 8
    N = batch * npoints                                         # 32 rows
    logits = jax.random.normal(k_logits, (N, num_classes), dtype=jnp.float32)
    pred = jax.nn.log_softmax(logits, axis=-1)
    target = jax.random.randint(k_target, (N,), 0, num_classes, dtype=jnp.int32)
    trans_feat = jax.random.normal(k_feat, (batch, 4, 4), dtype=jnp.float32)  # unused
    weight = jnp.linspace(0.5, 2.0, num_classes, dtype=jnp.float32)

    loss = jax.block_until_ready(get_loss_pallas(pred, target, trans_feat, weight))
    ref = _reference_nll_loss(pred, target, weight)
    assert jnp.allclose(loss, ref, rtol=1e-5, atol=1e-5), (loss, ref)

    # Case 2: same inputs with bf16 pred (native-dtype path, in-kernel cast).
    pred_bf16 = pred.astype(jnp.bfloat16)
    loss_bf = jax.block_until_ready(get_loss_pallas(pred_bf16, target, trans_feat, weight))
    ref_bf = _reference_nll_loss(pred_bf16.astype(jnp.float32), target, weight)
    assert jnp.allclose(loss_bf, ref_bf, rtol=1e-3, atol=1e-3), (loss_bf, ref_bf)

    # Case 3: ragged N, non-power-of-two class count, small blocks so the grid is
    # multi-step AND split across the parallel axis (exercises padded tail rows,
    # accumulator carry, and per-core partial outputs).
    N3, C3 = 700, 13
    logits3 = jax.random.normal(k_logits3, (N3, C3), dtype=jnp.float32)
    pred3 = jax.nn.log_softmax(logits3, axis=-1)
    target3 = jax.random.randint(k_target, (N3,), 0, C3, dtype=jnp.int32)
    weight3 = jnp.linspace(0.25, 1.75, C3, dtype=jnp.float32)
    loss3 = jax.block_until_ready(
        get_loss_pallas(pred3, target3, None, weight3, block_rows=32))
    ref3 = _reference_nll_loss(pred3, target3, weight3)
    assert jnp.allclose(loss3, ref3, rtol=1e-5, atol=1e-5), (loss3, ref3)

    print("KERNEL_OK")
</pallas_src>

<mosaic_0001>
module attributes {stable_mosaic.version = 11 : i64} {
  func.func @_nll_num_kernel(%arg0: i32, %arg1: i32, %arg2: memref<32x128xf32, #tpu.memory_space<vmem>>, %arg3: memref<32x128xi8, #tpu.memory_space<vmem>>, %arg4: memref<8x128xf32, #tpu.memory_space<vmem>>, %arg5: memref<8x128xf32, #tpu.memory_space<vmem>>) attributes {dimension_semantics = [#tpu.dimension_semantics<parallel>, #tpu.dimension_semantics<arbitrary>], iteration_bounds = array<i64: 1, 1>, scalar_prefetch = 0 : i64, scratch_operands = 1 : i64, tpu.core_type = #tpu.core_type<tc>, window_params = [{transform_indices = @transform_0, window_bounds = array<i64: 32, 128>}, {transform_indices = @transform_1, window_bounds = array<i64: 32, 128>}, {transform_indices = @transform_2, window_bounds = array<i64: 8, 128>}]} {
    %c0_i32 = arith.constant 0 : i32
    %0 = arith.cmpi eq, %arg1, %c0_i32 : i32
    %1 = arith.extui %0 : i1 to i32
    %c0_i32_0 = arith.constant 0 : i32
    %2 = arith.cmpi ne, %1, %c0_i32_0 : i32
    scf.if %2 {
      %cst_11 = arith.constant 0.000000e+00 : f32
      %21 = vector.broadcast %cst_11 : f32 to vector<8x128xf32>
      %c0_12 = arith.constant 0 : index
      %c0_13 = arith.constant 0 : index
      %22 = vector.load %arg5[%c0_12, %c0_13] : memref<8x128xf32, #tpu.memory_space<vmem>>, vector<8x128xf32>
      tpu.vector_store %arg5[%c0_12, %c0_13], %21 {strides = array<i32>} : memref<8x128xf32, #tpu.memory_space<vmem>>, vector<8x128xf32>,
    } else {
    }
    %c0 = arith.constant 0 : index
    %c0_1 = arith.constant 0 : index
    %3 = vector.load %arg2[%c0, %c0_1] : memref<32x128xf32, #tpu.memory_space<vmem>>, vector<32x128xf32>
    %c0_2 = arith.constant 0 : index
    %c0_3 = arith.constant 0 : index
    %4 = vector.load %arg3[%c0_2, %c0_3] : memref<32x128xi8, #tpu.memory_space<vmem>>, vector<32x128xi8>
    %5 = arith.extsi %4 : vector<32x128xi8> to vector<32x128xi32>
    %6 = tpu.iota {dimensions = array<i32: 1>} : vector<1x128xi32>
    %c7_i32 = arith.constant 7 : i32
    %7 = vector.broadcast %c7_i32 : i32 to vector<1x128xi32>
    %8 = arith.andi %6, %7 : vector<1x128xi32>
    %9 = vector.broadcast %8 : vector<1x128xi32> to vector<32x128xi32>
    %10 = arith.cmpi eq, %5, %9 : vector<32x128xi32>
    %cst = arith.constant 0.000000e+00 : f32
    %11 = vector.broadcast %cst : f32 to vector<32x128xf32>
    %12 = arith.select %10, %3, %11 : vector<32x128xi1>, vector<32x128xf32>
    %c0_4 = arith.constant 0 : index
    %c0_5 = arith.constant 0 : index
    %13 = vector.load %arg5[%c0_4, %c0_5] : memref<8x128xf32, #tpu.memory_space<vmem>>, vector<8x128xf32>
    %14 = vector.shape_cast %12 : vector<32x128xf32> to vector<4x8x128xf32>
    %cst_6 = arith.constant dense<0.000000e+00> : vector<8x128xf32>
    %15 = vector.multi_reduction <add>, %14, %cst_6 [0] : vector<4x8x128xf32> to vector<8x128xf32>
    %16 = arith.addf %13, %15 : vector<8x128xf32>
    %c0_7 = arith.constant 0 : index
    %c0_8 = arith.constant 0 : index
    %17 = vector.load %arg5[%c0_7, %c0_8] : memref<8x128xf32, #tpu.memory_space<vmem>>, vector<8x128xf32>
    tpu.vector_store %arg5[%c0_7, %c0_8], %16 {strides = array<i32>} : memref<8x128xf32, #tpu.memory_space<vmem>>, vector<8x128xf32>,
    %c0_i32_9 = arith.constant 0 : i32
    %18 = arith.cmpi eq, %arg1, %c0_i32_9 : i32
    %19 = arith.extui %18 : i1 to i32
    %c0_i32_10 = arith.constant 0 : i32
    %20 = arith.cmpi ne, %19, %c0_i32_10 : i32
    scf.if %20 {
      %c0_11 = arith.constant 0 : index
      %c0_12 = arith.constant 0 : index
      %21 = vector.load %arg5[%c0_11, %c0_12] : memref<8x128xf32, #tpu.memory_space<vmem>>, vector<8x128xf32>
      %c0_13 = arith.constant 0 : index
      %c0_14 = arith.constant 0 : index
      %22 = vector.load %arg4[%c0_13, %c0_14] : memref<8x128xf32, #tpu.memory_space<vmem>>, vector<8x128xf32>
      tpu.vector_store %arg4[%c0_13, %c0_14], %21 {strides = array<i32>} : memref<8x128xf32, #tpu.memory_space<vmem>>, vector<8x128xf32>,
    } else {
    }
    return
  }
  func.func @transform_0(%arg0: i32, %arg1: i32) -> (i32, i32) {
    %c1_i32 = arith.constant 1 : i32
    %0 = arith.muli %arg0, %c1_i32 : i32
    %1 = arith.addi %0, %arg1 : i32
    %c0_i32 = arith.constant 0 : i32
    %c0_i32_0 = arith.constant 0 : i32
    return %1, %c0_i32 : i32, i32
  }
  func.func @transform_1(%arg0: i32, %arg1: i32) -> (i32, i32) {
    %c1_i32 = arith.constant 1 : i32
    %0 = arith.muli %arg0, %c1_i32 : i32
    %1 = arith.addi %0, %arg1 : i32
    %c0_i32 = arith.constant 0 : i32
    %c0_i32_0 = arith.constant 0 : i32
    return %1, %c0_i32 : i32, i32
  }
  func.func @transform_2(%arg0: i32, %arg1: i32) -> (i32, i32) {
    %c0_i32 = arith.constant 0 : i32
    %c0_i32_0 = arith.constant 0 : i32
    return %arg0, %c0_i32 : i32, i32
  }
}

</mosaic_0001>

<llo_original>
// kernel: tpu_custom_call.1
$region0: #{tpu_custom_call.1}
  #allocation0 [shape = 'u32[]', space=smem, size = 0x4, offset = 0x4, fixed_abs, tag = 'smem constant byte address 0x4 - core index']
  #allocation1 [shape = 'u32[144,128]{1,0:T(1,128)}', space=vmem, size = 0x12000, scoped, tag = 'internal scratch']
  #allocation2 [shape = 'f32[8,128]{1,0:T(8,128)}', space=vmem, size = 0x1000, scoped, tag = 'scratch operand']
  %s0 = inlined_call_operand.hbm [shape: f32[32,128], index: 0, kind: input, shape index: {}]
  %s1 = inlined_call_operand.hbm [shape: s8[32,128], index: 1, kind: input, shape index: {}]
  %s2 = inlined_call_operand.hbm [shape: f32[8,128], index: 2, kind: output, shape index: {}]
  %s3 = sld [smem:[#allocation0]]
  $region34: #{tpu_custom_call.1} parent=0
    _
  %s5 = ssub.s32 1, %s3
  %s6 = scalar_select 0, %s5, %s3
  $region1: #{tpu_custom_call.1} parent=0
    #allocation3 [shape = 'u8[16384]{0}', space=vmem, size = 0x4000, scoped, tag = 'input window, operand 0, single buffered']
    #allocation4 [shape = 's32[1]{0}', space=sflag, size = 0x4, scoped, tag = 'scoped memory for tpu_custom_call.1']
    #allocation5 [shape = 's32[1]{0}', space=sflag, size = 0x4, scoped, tag = 'scoped memory for tpu_custom_call.1']
    #allocation6 [shape = 'u8[4096]{0}', space=vmem, size = 0x1000, scoped, tag = 'input window, operand 1, single buffered']
    #allocation7 [shape = 's32[1]{0}', space=sflag, size = 0x4, scoped, tag = 'scoped memory for tpu_custom_call.1']
    #allocation8 [shape = 'u8[4096]{0}', space=vmem, size = 0x1000, scoped, tag = 'output window, operand 0, single buffered']
    %7 = vsyncpa [#allocation4], 0
    %8 = vsyncpa [#allocation7], 0
    %9 = vsyncpa [#allocation5], 0
    // Predicated region
    $region2: #{tpu_custom_call.1} parent=1 // pred_check
      _
    $region3: #{tpu_custom_call.1} parent=1 // pred_check_branch
      %11 = sbr.rel (0) target = $region5
    $region4: #{tpu_custom_call.1} parent=1 // pred_region
      %s12 = sadd.s32 0, 0
      %s13 = smul.u32 4, %s12
      %s15 = ssub.s32 512, 512
      %16 = vsyncadd [#allocation4], %s15
      %s17 = smul.addr %s13, 128
      %s18 = scalar_lea.hbm %s0, %s17
      %s19 = sshll.u32 [#allocation3], 4
      %s20 = int_to_ptr.vmem [resolvable:$true] %s19
      %25 = dma.hbm_to_vmem [thread:$0]  %s18, 512, %s20, [#allocation4], 128, 128, 8
    $region5: #{tpu_custom_call.1} parent=1 // pred_fallthru
      _
    // Predicated region
    $region6: #{tpu_custom_call.1} parent=1 // pred_check
      _
    $region7: #{tpu_custom_call.1} parent=1 // pred_check_branch
      %27 = sbr.rel (0) target = $region9
    $region8: #{tpu_custom_call.1} parent=1 // pred_region
      %s28 = sadd.s32 0, 0
      %s30 = ssub.s32 128, 128
      %31 = vsyncadd [#allocation7], %s30
      %s32 = smul.addr %s28, 128
      %s33 = scalar_lea.hbm %s1, %s32
      %s35 = sshll.u32 [#allocation6], 4
      %s36 = int_to_ptr.vmem [resolvable:$true] %s35
      %38 = dma.hbm_to_vmem [thread:$0]  %s33, 128, %s36, [#allocation7]
    $region9: #{tpu_custom_call.1} parent=1 // pred_fallthru
      _
    // Predicated region
    $region10: #{tpu_custom_call.1} parent=1 // pred_check
      _
    $region11: #{tpu_custom_call.1} parent=1 // pred_check_branch
      %40 = sbr.rel (0) target = $region13
    $region12: #{tpu_custom_call.1} parent=1 // pred_region
      %41 = dma.done [#allocation4], 512
    $region13: #{tpu_custom_call.1} parent=1 // pred_fallthru
      _
    // Predicated region
    $region14: #{tpu_custom_call.1} parent=1 // pred_check
      _
    $region15: #{tpu_custom_call.1} parent=1 // pred_check_branch
      %43 = sbr.rel (0) target = $region17
    $region16: #{tpu_custom_call.1} parent=1 // pred_region
      %44 = dma.done [#allocation7], 128
    $region17: #{tpu_custom_call.1} parent=1 // pred_fallthru
      _
    %s45 = sadd.s32 0, 0
    %s46 = smul.u32 4, %s45
    %s47 = sadd.s32 0, 0
    %p48 = scmp.eq.s32.totalorder 0, 0
    // Predicated region
    $region18: #{tpu_custom_call.1} parent=1 // pred_check
      %p49 = pneg %p48
    $region19: #{tpu_custom_call.1} parent=1 // pred_check_branch
      %51 = sbr.rel (%p49) target = $region21
    $region20: #{tpu_custom_call.1} parent=1 // pred_region
      %52 = vst [vmem:[#allocation2] sm:$0xff] 0.0
    $region21: #{tpu_custom_call.1} parent=1 // pred_fallthru
      _
    %v53 = vld [vmem:[#allocation3] sm:$0xff]
    %v54 = vld [vmem:[#allocation3 + $0x8] sm:$0xff]
    %v55 = vld [vmem:[#allocation3 + $0x10] sm:$0xff]
    %v56 = vld [vmem:[#allocation3 + $0x18] sm:$0xff]
    %v57 = vld [vmem:[#allocation6] sm:$0xff]
    %v58 = vunpack.c.0.s8 %v57
    %v59 = vunpack.c.1.s8 %v57
    %v60 = vunpack.c.2.s8 %v57
    %v61 = vunpack.c.3.s8 %v57
    %v62 = vlaneseq
    %v63 = vand.u32 %v62, 127
    %v64 = vand.u32 %v63, 7
    %vm65 = vcmp.eq.s32.totalorder %v58, %v64
    %vm66 = vcmp.eq.s32.totalorder %v59, %v64
    %vm67 = vcmp.eq.s32.totalorder %v60, %v64
    %vm68 = vcmp.eq.s32.totalorder %v61, %v64
    %v69 = vsel %vm65, %v53, 0.0
    %v70 = vsel %vm66, %v54, 0.0
    %v71 = vsel %vm67, %v55, 0.0
    %v72 = vsel %vm68, %v56, 0.0
    %v73 = vld [vmem:[#allocation2] sm:$0xff]
    %v74 = vadd.f32 %v69, %v70
    %v75 = vadd.f32 %v74, %v71
    %v76 = vadd.f32 %v75, %v72
    %v77 = vadd.f32 %v73, %v76
    %78 = vst [vmem:[#allocation2] sm:$0xff] %v77
    // Predicated region
    $region22: #{tpu_custom_call.1} parent=1 // pred_check
      %p79 = pneg %p48
    $region23: #{tpu_custom_call.1} parent=1 // pred_check_branch
      %81 = sbr.rel (%p79) target = $region25
    $region24: #{tpu_custom_call.1} parent=1 // pred_region
      %v82 = vld [vmem:[#allocation2] sm:$0xff]
      %83 = vst [vmem:[#allocation8] sm:$0xff] %v82
    $region25: #{tpu_custom_call.1} parent=1 // pred_fallthru
      _
    // Predicated region
    $region26: #{tpu_custom_call.1} parent=1 // pred_check
      _
    $region27: #{tpu_custom_call.1} parent=1 // pred_check_branch
      %85 = sbr.rel (0) target = $region29
    $region28: #{tpu_custom_call.1} parent=1 // pred_region
      %s87 = ssub.s32 128, 128
      %88 = vsyncadd [#allocation5], %s87
      %s90 = sshll.u32 [#allocation8], 4
      %s91 = int_to_ptr.vmem [resolvable:$true] %s90
      %93 = dma.vmem_to_hbm [thread:$0]  %s91, 128, %s2, [#allocation5]
    $region29: #{tpu_custom_call.1} parent=1 // pred_fallthru
      _
    // Predicated region
    $region30: #{tpu_custom_call.1} parent=1 // pred_check
      _
    $region31: #{tpu_custom_call.1} parent=1 // pred_check_branch
      %95 = sbr.rel (0) target = $region33
    $region32: #{tpu_custom_call.1} parent=1 // pred_region
      %96 = dma.done [#allocation5], 128
    $region33: #{tpu_custom_call.1} parent=1 // pred_fallthru
      _
    %97 = vsyncpa [#allocation4], 1
    %98 = vsyncpa [#allocation7], 1
    %99 = vsyncpa [#allocation5], 1

</llo_original>
